<compile_context>
chip_gen: v7x
topology: tpu7x:2x2x1
jax: 0.10.0
libtpu: 0.0.40
codegen_flags: <defaults>
</compile_context>

<pallas_src>
import jax
import jax.numpy as jnp
from jax.experimental import pallas as pl
from jax.experimental.pallas import tpu as pltpu


def shortcut_kernel(x_ref, w1f_ref, b1f_ref, w2s_ref, s12_ref, sh2f_ref, o_ref):
    # x_ref: (C, tn) slab, channels on sublanes, N-tile on lanes.
    x = x_ref[...].astype(jnp.float32)

    # h = relu(conv1(norm1(x + x))) with the 2x and norm1 affine folded into
    # conv1's weight columns (w1f) and bias (b1f).
    h = jnp.dot(w1f_ref[...], x, preferred_element_type=jnp.float32) + b1f_ref[...]
    h = jnp.maximum(h, 0.0)                                              # (H, tn)

    # conv2 with norm2's scale pre-folded into its rows.
    x2s = jnp.dot(w2s_ref[...], h, preferred_element_type=jnp.float32)   # (C, tn)

    # y = norm2(norm1(2x) + conv2(h) + b2): residual scale/shift fully folded.
    o_ref[...] = (x * s12_ref[...] + x2s + sh2f_ref[...]).astype(o_ref.dtype)


def shortcut_layer(x, folded_params, *, tn=None):
    """x: (B, C, N) float32 -> (B, C, N) float32 (inference forward)."""
    B, C, N = x.shape
    w1f, b1f, w2s, s12, sh2f = folded_params
    H = w1f.shape[0]

    # Lane-dense tile along N; as large as reasonable to amortize per-step
    # overhead while staying well inside VMEM on all generations. Clamp to the
    # 128-padded N so we never DMA useless padding.
    n128 = 128 * pl.cdiv(N, 128)
    if tn is None:
        tn = 2048 if C * 2048 * 4 <= (2 << 20) else 1024
    tn = min(tn, n128)

    # Ragged N: pad to a multiple of tn (padded lanes compute finite junk that
    # is sliced off afterwards).
    Np = tn * pl.cdiv(N, tn)
    if Np != N:
        x = jnp.pad(x, ((0, 0), (0, 0), (0, Np - N)))

    # VMEM budget: double-buffered in+out tiles, resident constants (2 bufs),
    # live intermediates, plus margin; cap below v7x's 64 MiB physical VMEM.
    itemsize = 4
    tile_bytes = C * tn * itemsize
    weight_bytes = (H * C + C * H + H + 2 * C) * itemsize
    interm_bytes = (H + 2 * C) * tn * itemsize
    vmem_bytes = min(4 * tile_bytes + 2 * weight_bytes + interm_bytes + (8 << 20),
                     48 << 20)

    const = lambda shape: pl.BlockSpec(shape, lambda b, n: (0, 0))

    out = pl.pallas_call(
        shortcut_kernel,
        out_shape=jax.ShapeDtypeStruct((B, C, Np), x.dtype),
        grid_spec=pltpu.PrefetchScalarGridSpec(
            num_scalar_prefetch=0,
            grid=(B, Np // tn),
            in_specs=[
                pl.BlockSpec((pl.Squeezed(), C, tn), lambda b, n: (b, 0, n)),  # x
                const((H, C)),   # conv1 weight * norm1 scale * 2 (folded columns)
                const((H, 1)),   # conv1 bias + conv1 @ norm1 shift
                const((C, H)),   # conv2 weight * norm2 scale (folded rows)
                const((C, 1)),   # residual-path scale: 2*s1*s2
                const((C, 1)),   # residual-path shift: (sh1 + b2)*s2 + sh2
            ],
            out_specs=pl.BlockSpec((pl.Squeezed(), C, tn), lambda b, n: (b, 0, n)),
        ),
        compiler_params=pltpu.CompilerParams(
            dimension_semantics=("parallel", "parallel"),
            vmem_limit_bytes=vmem_bytes),
    )(x, w1f, b1f, w2s, s12, sh2f)

    return out[:, :, :N] if Np != N else out


# ---------------------------------------------------------------------------
# Parameter construction / folding / pure-JAX reference
# ---------------------------------------------------------------------------

def make_raw_params(key, input_channels, hidden_channels):
    """Raw PyTorch-style parameters (eval-mode BatchNorm running stats)."""
    C, H = input_channels, hidden_channels
    ks = jax.random.split(key, 12)
    w1 = 0.1 * jax.random.normal(ks[0], (H, C), jnp.float32)   # Conv1d k=1: (out,in)
    b1 = 0.1 * jax.random.normal(ks[1], (H,), jnp.float32)
    w2 = 0.1 * jax.random.normal(ks[2], (C, H), jnp.float32)
    b2 = 0.1 * jax.random.normal(ks[3], (C,), jnp.float32)
    g1 = 1.0 + 0.1 * jax.random.normal(ks[4], (C,), jnp.float32)
    be1 = 0.1 * jax.random.normal(ks[5], (C,), jnp.float32)
    m1 = 0.1 * jax.random.normal(ks[6], (C,), jnp.float32)
    v1 = jnp.abs(jax.random.normal(ks[7], (C,), jnp.float32)) + 0.5
    g2 = 1.0 + 0.1 * jax.random.normal(ks[8], (C,), jnp.float32)
    be2 = 0.1 * jax.random.normal(ks[9], (C,), jnp.float32)
    m2 = 0.1 * jax.random.normal(ks[10], (C,), jnp.float32)
    v2 = jnp.abs(jax.random.normal(ks[11], (C,), jnp.float32)) + 0.5
    return (w1, b1, w2, b2, g1, be1, m1, v1, g2, be2, m2, v2)


def fold_params(raw, eps=1e-5):
    """Fold BN affines, the residual 2x, and all biases into kernel constants.

    With s1 = g1/sqrt(v1+eps), sh1 = be1 - m1*s1 (and likewise s2, sh2):
      t  = norm1(2x)        = x*(2*s1) + sh1
      h  = relu(W1 t + b1)  = relu((W1*2s1) x + (W1 sh1 + b1))
      y  = norm2(t + W2 h + b2)
         = x*(2*s1*s2) + (W2*s2) h + (sh1*s2 + b2*s2 + sh2)
    """
    w1, b1, w2, b2, g1, be1, m1, v1, g2, be2, m2, v2 = raw
    H, C = w1.shape
    s1 = g1 / jnp.sqrt(v1 + eps)
    sh1 = be1 - m1 * s1
    s2 = g2 / jnp.sqrt(v2 + eps)
    sh2 = be2 - m2 * s2
    s1p = 2.0 * s1                      # x + dropout1(x) = 2x in eval mode
    w1f = w1 * s1p[None, :]             # (H, C) norm1 scale folded into columns
    b1f = w1 @ sh1 + b1                 # (H,)   norm1 shift folded into bias
    w2s = w2 * s2[:, None]              # (C, H) norm2 scale folded into rows
    s12 = s1p * s2                      # (C,)   residual-path scale
    sh2f = (sh1 + b2) * s2 + sh2        # (C,)   residual shift + conv2 bias
    return (w1f, b1f.reshape(H, 1), w2s, s12.reshape(C, 1), sh2f.reshape(C, 1))


def reference(x, raw, eps=1e-5):
    """Pure-JAX eval-mode forward matching the PyTorch module."""
    w1, b1, w2, b2, g1, be1, m1, v1, g2, be2, m2, v2 = raw
    cc = lambda v: v[None, :, None]
    t = x + x                                                   # dropout1 = identity
    t = (t - cc(m1)) / jnp.sqrt(cc(v1) + eps) * cc(g1) + cc(be1)
    h = jnp.maximum(jnp.einsum('hc,bcn->bhn', w1, t) + cc(b1), 0.0)
    x2 = jnp.einsum('ch,bhn->bcn', w2, h) + cc(b2)              # dropout2 = identity
    y = t + x2                                                  # dropout3 = identity
    y = (y - cc(m2)) / jnp.sqrt(cc(v2) + eps) * cc(g2) + cc(be2)
    return y


if __name__ == "__main__":
    B, C, N, H = 2, 16, 200, 32   # N not a multiple of 128: exercises pad+slice
    key = jax.random.PRNGKey(0)
    kx, kp = jax.random.split(key)
    x = jax.random.normal(kx, (B, C, N), jnp.float32)

    raw = make_raw_params(kp, input_channels=C, hidden_channels=H)
    folded = fold_params(raw)

    out = shortcut_layer(x, folded, tn=128)   # grid = (B, cdiv(N,128)) = (2, 2)
    out = jax.block_until_ready(out)

    ref = reference(x, raw)
    assert out.shape == (B, C, N)
    assert jnp.allclose(out, ref, atol=1e-4, rtol=1e-4), "mismatch vs reference"

    print("KERNEL_OK")
</pallas_src>

<mosaic_0001>
module attributes {stable_mosaic.version = 11 : i64} {
  func.func @shortcut_kernel(%arg0: i32, %arg1: i32, %arg2: memref<1x16x128xf32, #tpu.memory_space<vmem>>, %arg3: memref<32x16xf32, #tpu.memory_space<vmem>>, %arg4: memref<32x1xf32, #tpu.memory_space<vmem>>, %arg5: memref<16x32xf32, #tpu.memory_space<vmem>>, %arg6: memref<16x1xf32, #tpu.memory_space<vmem>>, %arg7: memref<16x1xf32, #tpu.memory_space<vmem>>, %arg8: memref<1x16x128xf32, #tpu.memory_space<vmem>>) attributes {dimension_semantics = [#tpu.dimension_semantics<parallel>, #tpu.dimension_semantics<parallel>], iteration_bounds = array<i64: 2, 2>, scalar_prefetch = 0 : i64, scratch_operands = 0 : i64, tpu.core_type = #tpu.core_type<tc>, window_params = [{transform_indices = @transform_0, window_bounds = array<i64: 1, 16, 128>}, {pipeline_mode = #tpu.pipeline_mode<synchronous>, transform_indices = @transform_1, window_bounds = array<i64: 32, 16>}, {pipeline_mode = #tpu.pipeline_mode<synchronous>, transform_indices = @transform_2, window_bounds = array<i64: 32, 1>}, {pipeline_mode = #tpu.pipeline_mode<synchronous>, transform_indices = @transform_3, window_bounds = array<i64: 16, 32>}, {pipeline_mode = #tpu.pipeline_mode<synchronous>, transform_indices = @transform_4, window_bounds = array<i64: 16, 1>}, {pipeline_mode = #tpu.pipeline_mode<synchronous>, transform_indices = @transform_5, window_bounds = array<i64: 16, 1>}, {transform_indices = @transform_6, window_bounds = array<i64: 1, 16, 128>}]} {
    %c0 = arith.constant 0 : index
    %c0_0 = arith.constant 0 : index
    %c0_1 = arith.constant 0 : index
    %0 = vector.load %arg2[%c0, %c0_0, %c0_1] : memref<1x16x128xf32, #tpu.memory_space<vmem>>, vector<1x16x128xf32>
    %1 = vector.shape_cast %0 : vector<1x16x128xf32> to vector<16x128xf32>
    %c0_2 = arith.constant 0 : index
    %c0_3 = arith.constant 0 : index
    %2 = vector.load %arg3[%c0_2, %c0_3] : memref<32x16xf32, #tpu.memory_space<vmem>>, vector<32x16xf32>
    %cst = arith.constant dense<0.000000e+00> : vector<32x128xf32>
    %3 = tpu.matmul %2, %1, %cst {dimension_numbers = #tpu.dot_dimension_numbers<[1], [0], [0], [1], [0, 0, 1, 1], [], []>} : vector<32x16xf32>, vector<16x128xf32>, vector<32x128xf32> -> vector<32x128xf32>
    %c0_4 = arith.constant 0 : index
    %c0_5 = arith.constant 0 : index
    %4 = vector.load %arg4[%c0_4, %c0_5] : memref<32x1xf32, #tpu.memory_space<vmem>>, vector<32x1xf32>
    %5 = vector.broadcast %4 : vector<32x1xf32> to vector<32x128xf32>
    %6 = arith.addf %3, %5 : vector<32x128xf32>
    %cst_6 = arith.constant 0.000000e+00 : f32
    %7 = vector.broadcast %cst_6 : f32 to vector<32x128xf32>
    %8 = arith.maximumf %6, %7 : vector<32x128xf32>
    %c0_7 = arith.constant 0 : index
    %c0_8 = arith.constant 0 : index
    %9 = vector.load %arg5[%c0_7, %c0_8] : memref<16x32xf32, #tpu.memory_space<vmem>>, vector<16x32xf32>
    %cst_9 = arith.constant dense<0.000000e+00> : vector<16x128xf32>
    %10 = tpu.matmul %9, %8, %cst_9 {dimension_numbers = #tpu.dot_dimension_numbers<[1], [0], [0], [1], [0, 0, 1, 1], [], []>} : vector<16x32xf32>, vector<32x128xf32>, vector<16x128xf32> -> vector<16x128xf32>
    %c0_10 = arith.constant 0 : index
    %c0_11 = arith.constant 0 : index
    %11 = vector.load %arg6[%c0_10, %c0_11] : memref<16x1xf32, #tpu.memory_space<vmem>>, vector<16x1xf32>
    %12 = vector.broadcast %11 : vector<16x1xf32> to vector<16x128xf32>
    %13 = arith.mulf %1, %12 : vector<16x128xf32>
    %14 = arith.addf %13, %10 : vector<16x128xf32>
    %c0_12 = arith.constant 0 : index
    %c0_13 = arith.constant 0 : index
    %15 = vector.load %arg7[%c0_12, %c0_13] : memref<16x1xf32, #tpu.memory_space<vmem>>, vector<16x1xf32>
    %16 = vector.broadcast %15 : vector<16x1xf32> to vector<16x128xf32>
    %17 = arith.addf %14, %16 : vector<16x128xf32>
    %c0_14 = arith.constant 0 : index
    %c0_15 = arith.constant 0 : index
    %c0_16 = arith.constant 0 : index
    %18 = vector.load %arg8[%c0_14, %c0_15, %c0_16] : memref<1x16x128xf32, #tpu.memory_space<vmem>>, vector<1x16x128xf32>
    %19 = vector.shape_cast %18 : vector<1x16x128xf32> to vector<16x128xf32>
    %20 = vector.shape_cast %17 : vector<16x128xf32> to vector<1x16x128xf32>
    tpu.vector_store %arg8[%c0_14, %c0_15, %c0_16], %20 {strides = array<i32>} : memref<1x16x128xf32, #tpu.memory_space<vmem>>, vector<1x16x128xf32>,
    return
  }
  func.func @transform_0(%arg0: i32, %arg1: i32) -> (i32, i32, i32) {
    %c0_i32 = arith.constant 0 : i32
    %c0_i32_0 = arith.constant 0 : i32
    return %arg0, %c0_i32, %arg1 : i32, i32, i32
  }
  func.func @transform_1(%arg0: i32, %arg1: i32) -> (i32, i32) {
    %c0_i32 = arith.constant 0 : i32
    %c0_i32_0 = arith.constant 0 : i32
    %c0_i32_1 = arith.constant 0 : i32
    return %c0_i32, %c0_i32_0 : i32, i32
  }
  func.func @transform_2(%arg0: i32, %arg1: i32) -> (i32, i32) {
    %c0_i32 = arith.constant 0 : i32
    %c0_i32_0 = arith.constant 0 : i32
    %c0_i32_1 = arith.constant 0 : i32
    return %c0_i32, %c0_i32_0 : i32, i32
  }
  func.func @transform_3(%arg0: i32, %arg1: i32) -> (i32, i32) {
    %c0_i32 = arith.constant 0 : i32
    %c0_i32_0 = arith.constant 0 : i32
    %c0_i32_1 = arith.constant 0 : i32
    return %c0_i32, %c0_i32_0 : i32, i32
  }
  func.func @transform_4(%arg0: i32, %arg1: i32) -> (i32, i32) {
    %c0_i32 = arith.constant 0 : i32
    %c0_i32_0 = arith.constant 0 : i32
    %c0_i32_1 = arith.constant 0 : i32
    return %c0_i32, %c0_i32_0 : i32, i32
  }
  func.func @transform_5(%arg0: i32, %arg1: i32) -> (i32, i32) {
    %c0_i32 = arith.constant 0 : i32
    %c0_i32_0 = arith.constant 0 : i32
    %c0_i32_1 = arith.constant 0 : i32
    return %c0_i32, %c0_i32_0 : i32, i32
  }
  func.func @transform_6(%arg0: i32, %arg1: i32) -> (i32, i32, i32) {
    %c0_i32 = arith.constant 0 : i32
    %c0_i32_0 = arith.constant 0 : i32
    return %arg0, %c0_i32, %arg1 : i32, i32, i32
  }
}

</mosaic_0001>

<llo_original>
// kernel: tpu_custom_call.1
$region0: #{tpu_custom_call.1}
  #allocation0 [shape = 'u32[]', space=smem, size = 0x4, offset = 0x4, fixed_abs, tag = 'smem constant byte address 0x4 - core index']
  #allocation1 [shape = 'u32[144,128]{1,0:T(1,128)}', space=vmem, size = 0x12000, scoped, tag = 'internal scratch']
  %s0 = inlined_call_operand.vmem [shape: f32[2,16,256], index: 0, kind: input, shape index: {}]
  %s1 = inlined_call_operand.vmem [shape: f32[32,16], index: 1, kind: input, shape index: {}]
  %s2 = inlined_call_operand.vmem [shape: f32[32,1], index: 2, kind: input, shape index: {}]
  %s3 = inlined_call_operand.vmem [shape: f32[16,32], index: 3, kind: input, shape index: {}]
  %s4 = inlined_call_operand.vmem [shape: f32[16,1], index: 4, kind: input, shape index: {}]
  %s5 = inlined_call_operand.vmem [shape: f32[16,1], index: 5, kind: input, shape index: {}]
  %s6 = inlined_call_operand.hbm [shape: f32[2,16,256], index: 6, kind: output, shape index: {}]
  %s7 = sld [smem:[#allocation0]]
  $region95: #{tpu_custom_call.1} parent=0
    _
  %s9 = ssub.s32 1, %s7
  %s10 = scalar_select 0, %s9, %s7
  $region1: #{tpu_custom_call.1} parent=0
    #allocation2 [shape = 'u8[16384]{0}', space=vmem, size = 0x4000, scoped, tag = 'input window, operand 0']
    #allocation3 [shape = 'u8[16384]{0}', space=vmem, size = 0x4000, scoped, tag = 'output window, operand 0']
    #allocation4 [shape = 's32[2]{0}', space=sflag, size = 0x8, scoped, tag = 'scoped memory for tpu_custom_call.1']
    %11 = vsyncpa [#allocation4], 0
    %s12 = scalar_lea.sflag [#allocation4], 1
    %13 = vsyncpa %s12, 0
    loop: start=0, step=1, limit=6
    $region2: #{tpu_custom_call.1} parent=1 // loop_pre_header
      _
    $region3: #{tpu_custom_call.1} parent=1 // loop_header
      %s15 = sphi 0, %s19
      %p16 = scmp.ge.s32.totalorder %s15, 6
      %s22 = sphi 0, %s34
      %s23 = sphi 0, %s30
      %s24 = sphi 0, %s22
      %s25 = sphi 0, %s23
      %s26 = sphi 0, %s24
      %s27 = sphi 0, %s25
      %s39 = sphi 0, %s41
      %s42 = sphi 0, %s39
      %s43 = sphi 0, %s42
      %s59 = sphi 0, %s43
      %s63 = sphi 0, %s63
      %s65 = sphi 0, %s63
      %s66 = sphi 0, %s65
      %s80 = sphi 0, %s66
      %s84 = sphi 0, %s84
      %s86 = sphi 0, %s84
      %s87 = sphi 0, %s86
      %s101 = sphi 0, %s87
      %s105 = sphi 0, %s105
      %s107 = sphi 0, %s105
      %s108 = sphi 0, %s107
      %s122 = sphi 0, %s108
      %s126 = sphi 0, %s126
      %s128 = sphi 0, %s126
      %s129 = sphi 0, %s128
      %s143 = sphi 0, %s129
      %s147 = sphi 0, %s147
      %s149 = sphi 0, %s147
      %s150 = sphi 0, %s149
      %s164 = sphi 0, %s150
      %s172 = sphi 0, %s174
      %s175 = sphi 0, %s172
      %s176 = sphi 0, %s175
      %s192 = sphi 0, %s176
    $region4: #{tpu_custom_call.1} parent=1 // loop_header_branch
      %18 = sbr.rel (%p16) target = $region8
    $region5: #{tpu_custom_call.1} parent=1 // loop_body
      %s20 = ssub.s32 %s15, 1
      %s21 = ssub.s32 %s15, 2
      %s28 = sadd.s32 1, %s23
      %p29 = scmp.ge.s32.totalorder %s28, 2
      %s30 = scalar_select %p29, 0, %s28
      %s31 = sadd.s32 1, %s22
      %s32 = scalar_select %p29, %s31, %s22
      %p33 = scmp.ge.s32.totalorder %s32, 2
      %s34 = scalar_select %p33, 0, %s32
      %s35 = ssub.s32 %s22, %s34
      %s36 = ssub.s32 %s23, %s30
      %s37 = sor.u32 %s35, %s36
      %p38 = scmp.eq.s32.totalorder %s37, 0
      %s40 = sadd.s32 %s39, 1
      %s41 = scalar_select %p38, %s39, %s40
      %p44 = pneg %p38
      %p45 = scmp.eq.s32.totalorder %s15, 3
      %p46 = por %p44, %p45
      %p47 = scmp.ne.s32.totalorder %s39, %s42
      %p48 = scmp.eq.s32.totalorder %s15, 0
      %p49 = por %p47, %p48
      %p50 = scmp.ne.s32.totalorder %s39, %s42
      %p51 = scmp.eq.s32.totalorder %s20, 3
      %p52 = por %p50, %p51
      %p53 = scmp.ne.s32.totalorder %s42, %s43
      %p54 = scmp.eq.s32.totalorder %s20, 0
      %p55 = por %p53, %p54
      %p56 = scmp.ne.s32.totalorder %s42, %s43
      %p57 = scmp.eq.s32.totalorder %s21, 3
      %p58 = por %p56, %p57
      %p60 = scmp.ne.s32.totalorder %s43, %s59
      %p61 = scmp.eq.s32.totalorder %s21, 0
      %p62 = por %p60, %p61
      %s64 = sadd.s32 %s63, 1
      %p67 = scmp.eq.s32.totalorder %s15, 3
      %p68 = scmp.ne.s32.totalorder %s63, %s65
      %p69 = scmp.eq.s32.totalorder %s15, 0
      %p70 = por %p68, %p69
      %p71 = scmp.ne.s32.totalorder %s63, %s65
      %p72 = scmp.eq.s32.totalorder %s20, 3
      %p73 = por %p71, %p72
      %p74 = scmp.ne.s32.totalorder %s65, %s66
      %p75 = scmp.eq.s32.totalorder %s20, 0
      %p76 = por %p74, %p75
      %p77 = scmp.ne.s32.totalorder %s65, %s66
      %p78 = scmp.eq.s32.totalorder %s21, 3
      %p79 = por %p77, %p78
      %p81 = scmp.ne.s32.totalorder %s66, %s80
      %p82 = scmp.eq.s32.totalorder %s21, 0
      %p83 = por %p81, %p82
      %s85 = sadd.s32 %s84, 1
      %p88 = scmp.eq.s32.totalorder %s15, 3
      %p89 = scmp.ne.s32.totalorder %s84, %s86
      %p90 = scmp.eq.s32.totalorder %s15, 0
      %p91 = por %p89, %p90
      %p92 = scmp.ne.s32.totalorder %s84, %s86
      %p93 = scmp.eq.s32.totalorder %s20, 3
      %p94 = por %p92, %p93
      %p95 = scmp.ne.s32.totalorder %s86, %s87
      %p96 = scmp.eq.s32.totalorder %s20, 0
      %p97 = por %p95, %p96
      %p98 = scmp.ne.s32.totalorder %s86, %s87
      %p99 = scmp.eq.s32.totalorder %s21, 3
      %p100 = por %p98, %p99
      %p102 = scmp.ne.s32.totalorder %s87, %s101
      %p103 = scmp.eq.s32.totalorder %s21, 0
      %p104 = por %p102, %p103
      %s106 = sadd.s32 %s105, 1
      %p109 = scmp.eq.s32.totalorder %s15, 3
      %p110 = scmp.ne.s32.totalorder %s105, %s107
      %p111 = scmp.eq.s32.totalorder %s15, 0
      %p112 = por %p110, %p111
      %p113 = scmp.ne.s32.totalorder %s105, %s107
      %p114 = scmp.eq.s32.totalorder %s20, 3
      %p115 = por %p113, %p114
      %p116 = scmp.ne.s32.totalorder %s107, %s108
      %p117 = scmp.eq.s32.totalorder %s20, 0
      %p118 = por %p116, %p117
      %p119 = scmp.ne.s32.totalorder %s107, %s108
      %p120 = scmp.eq.s32.totalorder %s21, 3
      %p121 = por %p119, %p120
      %p123 = scmp.ne.s32.totalorder %s108, %s122
      %p124 = scmp.eq.s32.totalorder %s21, 0
      %p125 = por %p123, %p124
      %s127 = sadd.s32 %s126, 1
      %p130 = scmp.eq.s32.totalorder %s15, 3
      %p131 = scmp.ne.s32.totalorder %s126, %s128
      %p132 = scmp.eq.s32.totalorder %s15, 0
      %p133 = por %p131, %p132
      %p134 = scmp.ne.s32.totalorder %s126, %s128
      %p135 = scmp.eq.s32.totalorder %s20, 3
      %p136 = por %p134, %p135
      %p137 = scmp.ne.s32.totalorder %s128, %s129
      %p138 = scmp.eq.s32.totalorder %s20, 0
      %p139 = por %p137, %p138
      %p140 = scmp.ne.s32.totalorder %s128, %s129
      %p141 = scmp.eq.s32.totalorder %s21, 3
      %p142 = por %p140, %p141
      %p144 = scmp.ne.s32.totalorder %s129, %s143
      %p145 = scmp.eq.s32.totalorder %s21, 0
      %p146 = por %p144, %p145
      %s148 = sadd.s32 %s147, 1
      %p151 = scmp.eq.s32.totalorder %s15, 3
      %p152 = scmp.ne.s32.totalorder %s147, %s149
      %p153 = scmp.eq.s32.totalorder %s15, 0
      %p154 = por %p152, %p153
      %p155 = scmp.ne.s32.totalorder %s147, %s149
      %p156 = scmp.eq.s32.totalorder %s20, 3
      %p157 = por %p155, %p156
      %p158 = scmp.ne.s32.totalorder %s149, %s150
      %p159 = scmp.eq.s32.totalorder %s20, 0
      %p160 = por %p158, %p159
      %p161 = scmp.ne.s32.totalorder %s149, %s150
      %p162 = scmp.eq.s32.totalorder %s21, 3
      %p163 = por %p161, %p162
      %p165 = scmp.ne.s32.totalorder %s150, %s164
      %p166 = scmp.eq.s32.totalorder %s21, 0
      %p167 = por %p165, %p166
      %s168 = ssub.s32 %s22, %s34
      %s169 = ssub.s32 %s23, %s30
      %s170 = sor.u32 %s168, %s169
      %p171 = scmp.eq.s32.totalorder %s170, 0
      %s173 = sadd.s32 %s172, 1
      %s174 = scalar_select %p171, %s172, %s173
      %p177 = pneg %p171
      %p178 = scmp.eq.s32.totalorder %s15, 3
      %p179 = por %p177, %p178
      %p180 = scmp.ne.s32.totalorder %s172, %s175
      %p181 = scmp.eq.s32.totalorder %s15, 0
      %p182 = por %p180, %p181
      %p183 = scmp.ne.s32.totalorder %s172, %s175
      %p184 = scmp.eq.s32.totalorder %s20, 3
      %p185 = por %p183, %p184
      %p186 = scmp.ne.s32.totalorder %s175, %s176
      %p187 = scmp.eq.s32.totalorder %s20, 0
      %p188 = por %p186, %p187
      %p189 = scmp.ne.s32.totalorder %s175, %s176
      %p190 = scmp.eq.s32.totalorder %s21, 3
      %p191 = por %p189, %p190
      %p193 = scmp.ne.s32.totalorder %s176, %s192
      %p194 = scmp.eq.s32.totalorder %s21, 0
      %p195 = por %p193, %p194
      %p196 = scmp.le.s32.totalorder 1, %s15
      %p197 = scmp.lt.s32.totalorder %s15, 5
      %p198 = pnand %p196, %p197
      %p199 = pneg %p198
      // Predicated region
      $region9: #{tpu_custom_call.1} parent=5 // pred_check
        _
      $region10: #{tpu_custom_call.1} parent=5 // pred_check_branch
        %201 = sbr.rel (%p198) target = $region12
      $region11: #{tpu_custom_call.1} parent=5 // pred_region
        %s202 = ssub.s32 %s15, 1
        // Predicated region
        $region13: #{tpu_custom_call.1} parent=11 // pred_check
          %p203 = pneg %p76
        $region14: #{tpu_custom_call.1} parent=11 // pred_check_branch
          %205 = sbr.rel (%p203) target = $region16
        $region15: #{tpu_custom_call.1} parent=11 // pred_region
          _
        $region16: #{tpu_custom_call.1} parent=11 // pred_fallthru
          _
        // Predicated region
        $region17: #{tpu_custom_call.1} parent=11 // pred_check
          %p206 = pneg %p97
        $region18: #{tpu_custom_call.1} parent=11 // pred_check_branch
          %208 = sbr.rel (%p206) target = $region20
        $region19: #{tpu_custom_call.1} parent=11 // pred_region
          _
        $region20: #{tpu_custom_call.1} parent=11 // pred_fallthru
          _
        // Predicated region
        $region21: #{tpu_custom_call.1} parent=11 // pred_check
          %p209 = pneg %p118
        $region22: #{tpu_custom_call.1} parent=11 // pred_check_branch
          %211 = sbr.rel (%p209) target = $region24
        $region23: #{tpu_custom_call.1} parent=11 // pred_region
          _
        $region24: #{tpu_custom_call.1} parent=11 // pred_fallthru
          _
        // Predicated region
        $region25: #{tpu_custom_call.1} parent=11 // pred_check
          %p212 = pneg %p139
        $region26: #{tpu_custom_call.1} parent=11 // pred_check_branch
          %214 = sbr.rel (%p212) target = $region28
        $region27: #{tpu_custom_call.1} parent=11 // pred_region
          _
        $region28: #{tpu_custom_call.1} parent=11 // pred_fallthru
          _
        // Predicated region
        $region29: #{tpu_custom_call.1} parent=11 // pred_check
          %p215 = pneg %p160
        $region30: #{tpu_custom_call.1} parent=11 // pred_check_branch
          %217 = sbr.rel (%p215) target = $region32
        $region31: #{tpu_custom_call.1} parent=11 // pred_region
          _
        $region32: #{tpu_custom_call.1} parent=11 // pred_fallthru
          _
      $region12: #{tpu_custom_call.1} parent=5 // pred_fallthru
        _
      %p218 = scmp.lt.s32.totalorder %s15, 4
      // Predicated region
      $region33: #{tpu_custom_call.1} parent=5 // pred_check
        %p219 = pneg %p218
      $region34: #{tpu_custom_call.1} parent=5 // pred_check_branch
        %221 = sbr.rel (%p219) target = $region36
      $region35: #{tpu_custom_call.1} parent=5 // pred_region
        // Predicated region
        $region37: #{tpu_custom_call.1} parent=35 // pred_check
          %p222 = pneg %p49
        $region38: #{tpu_custom_call.1} parent=35 // pred_check_branch
          %224 = sbr.rel (%p222) target = $region40
        $region39: #{tpu_custom_call.1} parent=35 // pred_region
          %s225 = sand.u32 %s39, 1
          %s226 = sand.u32 %s39, 1
          %s227 = smul.addr %s226, 16
          %s228 = scalar_lea.vmem [#allocation2], %s227
          %s229 = smul.addr %s22, 4
          %s230 = sadd.s32 %s23, %s229
          %s231 = smul.addr %s230, 8
          %s232 = scalar_lea.vmem %s0, %s231
          // Predicated region
          $region41: #{tpu_custom_call.1} parent=39 // pred_check
            _
          $region42: #{tpu_custom_call.1} parent=39 // pred_check_branch
            %234 = sbr.rel (0) target = $region44
          $region43: #{tpu_custom_call.1} parent=39 // pred_region
            // Predicated region
            $region45: #{tpu_custom_call.1} parent=43 // pred_check
              _
            $region46: #{tpu_custom_call.1} parent=43 // pred_check_branch
              %236 = sbr.rel (0) target = $region48
            $region47: #{tpu_custom_call.1} parent=43 // pred_region
              // Predicated region
              $region60: #{tpu_custom_call.1} parent=47 // pred_check
                _
              $region61: #{tpu_custom_call.1} parent=47 // pred_check_branch
                %253 = sbr.rel (0) target = $region63
              $region62: #{tpu_custom_call.1} parent=47 // pred_region
                loop: start=0, step=1, limit=1
                $region64: #{tpu_custom_call.1} parent=62 // loop_pre_header
                  _
                $region65: #{tpu_custom_call.1} parent=62 // loop_header
                  %s255 = sphi 0, %s259
                  %p256 = scmp.ge.s32.totalorder %s255, 1
                  %s260 = sphi %s232, %s232
                  %s261 = sphi %s228, %s228
                $region66: #{tpu_custom_call.1} parent=62 // loop_header_branch
                  %258 = sbr.rel (%p256) target = $region70
                $region67: #{tpu_custom_call.1} parent=62 // loop_body
                  %v262 = vld [vmem:[%s260] sm:$0xff]
                  %263 = vst [vmem:[%s261] sm:$0xff] %v262
                  %v264 = vld [vmem:[%s260 + $0x10] sm:$0xff]
                  %265 = vst [vmem:[%s261 + $0x8] sm:$0xff] %v264
                $region68: #{tpu_custom_call.1} parent=62 // loop_footer
                  %s259 = sadd.s32 1, %s255
                $region69: #{tpu_custom_call.1} parent=62 // loop_footer_branch
                  %254 = sbr.rel target = $region65
                $region70: #{tpu_custom_call.1} parent=62 // loop_exit
                  _
              $region63: #{tpu_custom_call.1} parent=47 // pred_fallthru
                _
              // Predicated region
              $region71: #{tpu_custom_call.1} parent=47 // pred_check
                _
              $region72: #{tpu_custom_call.1} parent=47 // pred_check_branch
                %267 = sbr.rel target = $region74
              $region73: #{tpu_custom_call.1} parent=47 // pred_region
                _
              $region74: #{tpu_custom_call.1} parent=47 // pred_fallthru
                _
            $region48: #{tpu_custom_call.1} parent=43 // pred_fallthru
              _
            // Predicated region
            $region49: #{tpu_custom_call.1} parent=43 // pred_check
              _
            $region50: #{tpu_custom_call.1} parent=43 // pred_check_branch
              %238 = sbr.rel target = $region52
            $region51: #{tpu_custom_call.1} parent=43 // pred_region
              loop: start=0, step=1, limit=1
              $region53: #{tpu_custom_call.1} parent=51 // loop_pre_header
                _
              $region54: #{tpu_custom_call.1} parent=51 // loop_header
                %s241 = sphi 0, %s245
                %p242 = scmp.ge.s32.totalorder %s241, 1
                %s246 = sphi %s232, %s232
                %s247 = sphi %s228, %s228
              $region55: #{tpu_custom_call.1} parent=51 // loop_header_branch
                %244 = sbr.rel (%p242) target = $region59
              $region56: #{tpu_custom_call.1} parent=51 // loop_body
                %v248 = vld [vmem:[%s246] sm:$0xff]
                %249 = vst [vmem:[%s247] sm:$0xff] %v248
                %v250 = vld [vmem:[%s246 + $0x10] sm:$0xff]
                %251 = vst [vmem:[%s247 + $0x8] sm:$0xff] %v250
              $region57: #{tpu_custom_call.1} parent=51 // loop_footer
                %s245 = sadd.s32 1, %s241
              $region58: #{tpu_custom_call.1} parent=51 // loop_footer_branch
                %240 = sbr.rel target = $region54
              $region59: #{tpu_custom_call.1} parent=51 // loop_exit
                _
            $region52: #{tpu_custom_call.1} parent=43 // pred_fallthru
              _
          $region44: #{tpu_custom_call.1} parent=39 // pred_fallthru
            _
          %268 = vnop
        $region40: #{tpu_custom_call.1} parent=35 // pred_fallthru
          _
      $region36: #{tpu_custom_call.1} parent=5 // pred_fallthru
        _
      %p269 = scmp.le.s32.totalorder 1, %s15
      %p270 = scmp.lt.s32.totalorder %s15, 5
      %p271 = pnand %p269, %p270
      %p272 = pneg %p271
      // Predicated region
      $region75: #{tpu_custom_call.1} parent=5 // pred_check
        _
      $region76: #{tpu_custom_call.1} parent=5 // pred_check_branch
        %274 = sbr.rel (%p271) target = $region78
      $region77: #{tpu_custom_call.1} parent=5 // pred_region
        %s275 = ssub.s32 %s15, 1
        %s276 = sand.u32 %s42, 1
        %s277 = sand.u32 %s42, 1
        %s278 = smul.addr %s277, 16
        %s279 = scalar_lea.vmem [#allocation2], %s278
        // Predicated region
        $region79: #{tpu_custom_call.1} parent=77 // pred_check
          %p280 = pneg %p55
        $region80: #{tpu_custom_call.1} parent=77 // pred_check_branch
          %282 = sbr.rel (%p280) target = $region82
        $region81: #{tpu_custom_call.1} parent=77 // pred_region
          _
        $region82: #{tpu_custom_call.1} parent=77 // pred_fallthru
          _
        %s283 = sand.u32 %s42, 1
        %s284 = sand.u32 %s42, 1
        %s285 = smul.addr %s284, 16
        %s286 = scalar_lea.vmem [#allocation2], %s285
        %p287 = pneg %p55
        %p288 = pneg %p52
        %p289 = pneg %p76
        %p290 = pneg %p73
        %p291 = pneg %p97
        %p292 = pneg %p94
        %p293 = pneg %p118
        %p294 = pneg %p115
        %p295 = pneg %p139
        %p296 = pneg %p136
        %p297 = pneg %p160
        %p298 = pneg %p157
        %p299 = pneg %p188
        %p300 = pneg %p185
        %s301 = sand.u32 %s175, 1
        %s302 = scalar_lea.sflag [#allocation4], %s301
        %s303 = sand.u32 %s175, 1
        %s304 = smul.addr %s303, 16
        %s305 = scalar_lea.vmem [#allocation3], %s304
        %v306 = vld [vmem:[%s279] sm:$0xff]
        %v307 = vld [vmem:[%s279 + $0x8] sm:$0xff]
        %v308 = vld [vmem:[%s1] sm:$0xff]
        %v309 = vld [vmem:[%s1 + $0x8] sm:$0xff]
        %v310 = vld [vmem:[%s1 + $0x10] sm:$0xff]
        %v311 = vld [vmem:[%s1 + $0x18] sm:$0xff]
        %v312 = vld [vmem:[%s2] sm:$0xff]
        %v313 = vld [vmem:[%s2 + $0x8] sm:$0xff]
        %v314 = vld [vmem:[%s2 + $0x10] sm:$0xff]
        %v315 = vld [vmem:[%s2 + $0x18] sm:$0xff]
        %317 = vset.pattern.permute.xlu0 0
        %318 = vperm.xlu0 %317, %v312
        %v319 = vpop.permute.xlu0 %318
        %322 = vset.pattern.permute.xlu0 0
        %323 = vperm.xlu0 %322, %v313
        %v324 = vpop.permute.xlu0 %323
        %327 = vset.pattern.permute.xlu0 0
        %328 = vperm.xlu0 %327, %v314
        %v329 = vpop.permute.xlu0 %328
        %332 = vset.pattern.permute.xlu0 0
        %333 = vperm.xlu0 %332, %v315
        %v334 = vpop.permute.xlu0 %333
        %vm336 = vcmask 130048
        %v338 = vsel %vm336, %v308, 0
        %v341 = vsel %vm336, %v309, 0
        %v344 = vsel %vm336, %v310, 0
        %v347 = vsel %vm336, %v311, 0
        %349 = vmatprep.subr.mxu0 0.0
        %350 = vmatpush1.msra.mxu0 %v306
        %351 = vmatprep.subr.mxu0 0.0
        %352 = vmatpush1.msra.mxu0 %v307
        %353 = vmatprep.subr.mxu0 0.0
        %354 = vmatpush1.msra.mxu0 0.0
        %355 = vmatprep.subr.mxu0 0.0
        %356 = vmatpush1.msra.mxu0 0.0
        %357 = vmatprep.subr.mxu0 0.0
        %358 = vmatpush1.msra.mxu0 0.0
        %359 = vmatprep.subr.mxu0 0.0
        %360 = vmatpush1.msra.mxu0 0.0
        %361 = vmatprep.subr.mxu0 0.0
        %362 = vmatpush1.msra.mxu0 0.0
        %363 = vmatprep.subr.mxu0 0.0
        %364 = vmatpush1.msra.mxu0 0.0
        %365 = vmatprep.subr.mxu0 0.0
        %366 = vmatpush1.msra.mxu0 0.0
        %367 = vmatprep.subr.mxu0 0.0
        %368 = vmatpush1.msra.mxu0 0.0
        %369 = vmatprep.subr.mxu0 0.0
        %370 = vmatpush1.msra.mxu0 0.0
        %371 = vmatprep.subr.mxu0 0.0
        %372 = vmatpush1.msra.mxu0 0.0
        %373 = vmatprep.subr.mxu0 0.0
        %374 = vmatpush1.msra.mxu0 0.0
        %375 = vmatprep.subr.mxu0 0.0
        %376 = vmatpush1.msra.mxu0 0.0
        %377 = vmatprep.subr.mxu0 0.0
        %378 = vmatpush1.msra.mxu0 0.0
        %379 = vmatprep.subr.mxu0 0.0
        %380 = vmatpush1.msra.mxu0 0.0
        %381 = vmatprep.subr.mxu0 0.0
        %382 = vmatpush1.msra.mxu0 0.0
        %383 = vmatprep.subr.mxu0 0.0
        %384 = vmatpush1.msra.mxu0 0.0
        %385 = vmatprep.subr.mxu0 0.0
        %386 = vmatpush1.msra.mxu0 0.0
        %387 = vmatprep.subr.mxu0 0.0
        %388 = vmatpush1.msra.mxu0 0.0
        %389 = vmatprep.subr.mxu0 0.0
        %390 = vmatpush1.msra.mxu0 0.0
        %391 = vmatprep.subr.mxu0 0.0
        %392 = vmatpush1.msra.mxu0 0.0
        %393 = vmatprep.subr.mxu0 0.0
        %394 = vmatpush1.msra.mxu0 0.0
        %395 = vmatprep.subr.mxu0 0.0
        %396 = vmatpush1.msra.mxu0 0.0
        %397 = vmatprep.subr.mxu0 0.0
        %398 = vmatpush1.msra.mxu0 0.0
        %399 = vmatprep.subr.mxu0 0.0
        %400 = vmatpush1.msra.mxu0 0.0
        %401 = vmatprep.subr.mxu0 0.0
        %402 = vmatpush1.msra.mxu0 0.0
        %403 = vmatprep.subr.mxu0 0.0
        %404 = vmatpush1.msra.mxu0 0.0
        %405 = vmatprep.subr.mxu0 0.0
        %406 = vmatpush1.msra.mxu0 0.0
        %407 = vmatprep.subr.mxu0 0.0
        %408 = vmatpush1.msra.mxu0 0.0
        %409 = vmatprep.subr.mxu0 0.0
        %410 = vmatpush1.msra.mxu0 0.0
        %411 = vmatprep.subr.mxu0 0.0
        %412 = vmatpush1.msra.mxu0 0.0
        %413 = vmatprep.mubr.f32.mxu0 0.0
        %414 = vmatmul.mubr.f32.gmra.mrb[0].mxu0 %v338
        %v415 = vpop.f32.mrb[0].mxu0
        %v416 = vadd.f32 %v319, %v415
        %v417 = vpop.f32.mrb[0].mxu0
        %418 = vmatprep.mubr.f32.mxu0 0.0
        %419 = vmatmul.mubr.f32.gmra.mrb[0].mxu0 %v341
        %v420 = vpop.f32.mrb[0].mxu0
        %v421 = vadd.f32 %v324, %v420
        %v422 = vpop.f32.mrb[0].mxu0
        %423 = vmatprep.mubr.f32.mxu0 0.0
        %424 = vmatmul.mubr.f32.gmra.mrb[0].mxu0 %v344
        %v425 = vpop.f32.mrb[0].mxu0
        %v426 = vadd.f32 %v329, %v425
        %v427 = vpop.f32.mrb[0].mxu0
        %428 = vmatprep.mubr.f32.mxu0 0.0
        %429 = vmatmul.mubr.f32.gmra.mrb[0].mxu0 %v347
        %v430 = vpop.f32.mrb[0].mxu0
        %v431 = vadd.f32 %v334, %v430
        %v432 = vpop.f32.mrb[0].mxu0
        %433 = vdwg.mxu0
        %v434 = vmax.f32 %v416, 0.0
        %v435 = vmax.f32 %v421, 0.0
        %v436 = vmax.f32 %v426, 0.0
        %v437 = vmax.f32 %v431, 0.0
        %v438 = vld [vmem:[%s3] sm:$0xff]
        %v439 = vld [vmem:[%s3 + $0x8] sm:$0xff]
        %vm440 = vcmask 261120
        %v442 = vsel %vm440, %v438, 0
        %v445 = vsel %vm440, %v439, 0
        %447 = vmatprep.subr.mxu0 0.0
        %448 = vmatpush1.msra.mxu0 %v434
        %449 = vmatprep.subr.mxu0 0.0
        %450 = vmatpush1.msra.mxu0 %v435
        %451 = vmatprep.subr.mxu0 0.0
        %452 = vmatpush1.msra.mxu0 %v436
        %453 = vmatprep.subr.mxu0 0.0
        %454 = vmatpush1.msra.mxu0 %v437
        %455 = vmatprep.subr.mxu0 0.0
        %456 = vmatpush1.msra.mxu0 0.0
        %457 = vmatprep.subr.mxu0 0.0
        %458 = vmatpush1.msra.mxu0 0.0
        %459 = vmatprep.subr.mxu0 0.0
        %460 = vmatpush1.msra.mxu0 0.0
        %461 = vmatprep.subr.mxu0 0.0
        %462 = vmatpush1.msra.mxu0 0.0
        %463 = vmatprep.subr.mxu0 0.0
        %464 = vmatpush1.msra.mxu0 0.0
        %465 = vmatprep.subr.mxu0 0.0
        %466 = vmatpush1.msra.mxu0 0.0
        %467 = vmatprep.subr.mxu0 0.0
        %468 = vmatpush1.msra.mxu0 0.0
        %469 = vmatprep.subr.mxu0 0.0
        %470 = vmatpush1.msra.mxu0 0.0
        %471 = vmatprep.subr.mxu0 0.0
        %472 = vmatpush1.msra.mxu0 0.0
        %473 = vmatprep.subr.mxu0 0.0
        %474 = vmatpush1.msra.mxu0 0.0
        %475 = vmatprep.subr.mxu0 0.0
        %476 = vmatpush1.msra.mxu0 0.0
        %477 = vmatprep.subr.mxu0 0.0
        %478 = vmatpush1.msra.mxu0 0.0
        %479 = vmatprep.subr.mxu0 0.0
        %480 = vmatpush1.msra.mxu0 0.0
        %481 = vmatprep.subr.mxu0 0.0
        %482 = vmatpush1.msra.mxu0 0.0
        %483 = vmatprep.subr.mxu0 0.0
        %484 = vmatpush1.msra.mxu0 0.0
        %485 = vmatprep.subr.mxu0 0.0
        %486 = vmatpush1.msra.mxu0 0.0
        %487 = vmatprep.subr.mxu0 0.0
        %488 = vmatpush1.msra.mxu0 0.0
        %489 = vmatprep.subr.mxu0 0.0
        %490 = vmatpush1.msra.mxu0 0.0
        %491 = vmatprep.subr.mxu0 0.0
        %492 = vmatpush1.msra.mxu0 0.0
        %493 = vmatprep.subr.mxu0 0.0
        %494 = vmatpush1.msra.mxu0 0.0
        %495 = vmatprep.subr.mxu0 0.0
        %496 = vmatpush1.msra.mxu0 0.0
        %497 = vmatprep.subr.mxu0 0.0
        %498 = vmatpush1.msra.mxu0 0.0
        %499 = vmatprep.subr.mxu0 0.0
        %500 = vmatpush1.msra.mxu0 0.0
        %501 = vmatprep.subr.mxu0 0.0
        %502 = vmatpush1.msra.mxu0 0.0
        %503 = vmatprep.subr.mxu0 0.0
        %504 = vmatpush1.msra.mxu0 0.0
        %505 = vmatprep.subr.mxu0 0.0
        %506 = vmatpush1.msra.mxu0 0.0
        %507 = vmatprep.subr.mxu0 0.0
        %508 = vmatpush1.msra.mxu0 0.0
        %509 = vmatprep.subr.mxu0 0.0
        %510 = vmatpush1.msra.mxu0 0.0
        %511 = vmatprep.mubr.f32.mxu0 0.0
        %512 = vmatmul.mubr.f32.gmra.mrb[0].mxu0 %v442
        %v513 = vpop.f32.mrb[0].mxu0
        %v514 = vadd.f32 0.0, %v513
        %v515 = vpop.f32.mrb[0].mxu0
        %516 = vmatprep.mubr.f32.mxu0 0.0
        %517 = vmatmul.mubr.f32.gmra.mrb[0].mxu0 %v445
        %v518 = vpop.f32.mrb[0].mxu0
        %v519 = vadd.f32 0.0, %v518
        %v520 = vpop.f32.mrb[0].mxu0
        %521 = vdwg.mxu0
        %v522 = vld [vmem:[%s4] sm:$0xff]
        %v523 = vld [vmem:[%s4 + $0x8] sm:$0xff]
        %525 = vset.pattern.permute.xlu0 0
        %526 = vperm.xlu0 %525, %v522
        %v527 = vpop.permute.xlu0 %526
        %530 = vset.pattern.permute.xlu0 0
        %531 = vperm.xlu0 %530, %v523
        %v532 = vpop.permute.xlu0 %531
        %v534 = vmul.f32 %v306, %v527
        %v535 = vmul.f32 %v307, %v532
        %v536 = vadd.f32 %v534, %v514
        %v537 = vadd.f32 %v535, %v519
        %v538 = vld [vmem:[%s5] sm:$0xff]
        %v539 = vld [vmem:[%s5 + $0x8] sm:$0xff]
        %541 = vset.pattern.permute.xlu0 0
        %542 = vperm.xlu0 %541, %v538
        %v543 = vpop.permute.xlu0 %542
        %546 = vset.pattern.permute.xlu0 0
        %547 = vperm.xlu0 %546, %v539
        %v548 = vpop.permute.xlu0 %547
        %v550 = vadd.f32 %v536, %v543
        %v551 = vadd.f32 %v537, %v548
        %552 = vst [vmem:[%s305] sm:$0xff] %v550
        %553 = vst [vmem:[%s305 + $0x8] sm:$0xff] %v551
        %s554 = sand.u32 %s175, 1
        %s555 = scalar_lea.sflag [#allocation4], %s554
        %s556 = sand.u32 %s175, 1
        %s557 = smul.addr %s556, 16
        %s558 = scalar_lea.vmem [#allocation3], %s557
        // Predicated region
        $region83: #{tpu_custom_call.1} parent=77 // pred_check
          %p559 = pneg %p185
        $region84: #{tpu_custom_call.1} parent=77 // pred_check_branch
          %561 = sbr.rel (%p559) target = $region86
        $region85: #{tpu_custom_call.1} parent=77 // pred_region
          %s563 = ssub.s32 256, 256
          %564 = vsyncadd %s555, %s563
          %s565 = smul.addr %s24, 4
          %s566 = sadd.s32 %s25, %s565
          %s567 = smul.addr %s566, 128
          %s568 = scalar_lea.hbm %s6, %s567
          %s569 = sshll.u32 %s558, 4
          %s570 = int_to_ptr.vmem [resolvable:$true] %s569
          %575 = dma.vmem_to_hbm [thread:$0]  %s570, 256, %s568, %s555, 128, 256, 8
        $region86: #{tpu_custom_call.1} parent=77 // pred_fallthru
          _
      $region78: #{tpu_custom_call.1} parent=5 // pred_fallthru
        _
      %p576 = scmp.le.s32.totalorder 2, %s15
      // Predicated region
      $region87: #{tpu_custom_call.1} parent=5 // pred_check
        %p577 = pneg %p576
      $region88: #{tpu_custom_call.1} parent=5 // pred_check_branch
        %579 = sbr.rel (%p577) target = $region90
      $region89: #{tpu_custom_call.1} parent=5 // pred_region
        %s580 = ssub.s32 %s15, 2
        // Predicated region
        $region91: #{tpu_custom_call.1} parent=89 // pred_check
          %p581 = pneg %p191
        $region92: #{tpu_custom_call.1} parent=89 // pred_check_branch
          %583 = sbr.rel (%p581) target = $region94
        $region93: #{tpu_custom_call.1} parent=89 // pred_region
          %s584 = sand.u32 %s176, 1
          %s585 = scalar_lea.sflag [#allocation4], %s584
          %s586 = sand.u32 %s176, 1
          %s587 = smul.addr %s586, 16
          %s588 = scalar_lea.vmem [#allocation3], %s587
          %589 = dma.done %s585, 256
        $region94: #{tpu_custom_call.1} parent=89 // pred_fallthru
          _
      $region90: #{tpu_custom_call.1} parent=5 // pred_fallthru
        _
    $region6: #{tpu_custom_call.1} parent=1 // loop_footer
      %s19 = sadd.s32 1, %s15
    $region7: #{tpu_custom_call.1} parent=1 // loop_footer_branch
      %14 = sbr.rel target = $region3
    $region8: #{tpu_custom_call.1} parent=1 // loop_exit
      _
    %590 = vsyncpa [#allocation4], 1
    %s591 = scalar_lea.sflag [#allocation4], 1
    %592 = vsyncpa %s591, 1

</llo_original>
